<compile_context>
chip_gen: v5e
topology: v5e:2x2
jax: 0.10.0
libtpu: 0.0.40
codegen_flags: <defaults>
</compile_context>

<pallas_src>
import jax
import jax.numpy as jnp
from jax.experimental import pallas as pl
from jax.experimental.pallas import tpu as pltpu


def _round_up(x, m):
    return ((x + m - 1) // m) * m


# ---------------------------------------------------------------------------
# Kernel 1: node-level projection  P = [ h @ W1a + b1 | h @ W1b ]   ([N, 2H])
# ---------------------------------------------------------------------------
def node_proj_kernel(h_ref, w_ref, b_ref, p_ref):
    # h_ref: (TN, F)   w_ref: (F, 2H)   b_ref: (1, 2H)   p_ref: (TN, 2H)
    p = jnp.dot(h_ref[...], w_ref[...], preferred_element_type=jnp.float32)
    p_ref[...] = (p + b_ref[...]).astype(p_ref.dtype)


# ---------------------------------------------------------------------------
# Kernel 2: per-edge score  s = relu(a + b) . w2 + b2   (lane-dense output)
# ---------------------------------------------------------------------------
def edge_score_kernel(a_ref, b_ref, w2_ref, b2_ref, out_ref):
    # a_ref, b_ref : (TE, H)  gathered node projections (b1 already folded in)
    # w2_ref       : (1, H)   second-layer weight row (VMEM)
    # b2_ref       : (1, 1)   scalar bias (SMEM)
    # out_ref      : (1, TE)  lane-dense score row for this edge tile
    h1 = jnp.maximum(a_ref[...] + b_ref[...], 0.0)              # VPU
    s = jnp.sum(h1 * w2_ref[...], axis=-1) + b2_ref[0, 0]       # VPU mul + XLU reduce
    out_ref[...] = s[None, :].astype(out_ref.dtype)


def mlp_predictor_forward(h, src, dst, w1_t, b1, w2_t, b2,
                          *, tile_e_max=1024, tile_n_max=256):
    """h: [N, F] node features; src/dst: [E] int32 edge endpoints.
    w1_t: [2F, H] (= torch W1.weight.T), b1: [H]
    w2_t: [H, 1]  (= torch W2.weight.T), b2: [1]
    Returns score: [E] float32  (== W2(relu(W1(cat(h[src], h[dst])))).squeeze(1))."""
    N, F = h.shape
    H = w1_t.shape[1]
    E = src.shape[0]
    f32 = jnp.float32

    h = h.astype(f32)
    w1_t = w1_t.astype(f32)

    # Split W1^T into src/dst halves, stacked along the output axis so one
    # [N,F]@[F,2H] matmul yields both per-node projections.  Fold b1 into the
    # src half so the edge kernel only needs relu(a + b).
    w_stack = jnp.concatenate([w1_t[:F, :], w1_t[F:, :]], axis=1)            # (F, 2H)
    b_stack = jnp.concatenate([b1.astype(f32), jnp.zeros((H,), f32)]
                              ).reshape(1, 2 * H)                            # (1, 2H)

    # --- stage 1: per-node projection (tiled over nodes) --------------------
    tn = min(tile_n_max, _round_up(N, 8))
    n_pad = _round_up(N, tn)
    h_p = jnp.pad(h, ((0, n_pad - N), (0, 0)))

    proj = pl.pallas_call(
        node_proj_kernel,
        out_shape=jax.ShapeDtypeStruct((n_pad, 2 * H), f32),
        grid_spec=pltpu.PrefetchScalarGridSpec(
            num_scalar_prefetch=0,
            grid=(n_pad // tn,),
            in_specs=[
                pl.BlockSpec((tn, F), lambda i: (i, 0)),
                pl.BlockSpec((F, 2 * H), lambda i: (0, 0)),
                pl.BlockSpec((1, 2 * H), lambda i: (0, 0)),
            ],
            out_specs=pl.BlockSpec((tn, 2 * H), lambda i: (i, 0)),
        ),
        compiler_params=pltpu.CompilerParams(
            dimension_semantics=("parallel",),
            vmem_limit_bytes=32 * 1024 * 1024,
        ),
        cost_estimate=pl.CostEstimate(
            flops=2 * n_pad * F * 2 * H,
            transcendentals=0,
            bytes_accessed=4 * (n_pad * F + F * 2 * H + 2 * H + n_pad * 2 * H),
        ),
    )(h_p, w_stack, b_stack)

    # --- stage 2: gather endpoint projections & score every edge ------------
    # TODO(synk): the edge-endpoint gather stays as an XLA gather in the
    # wrapper; an in-kernel DMA gather driven by scalar-prefetched src/dst
    # indices is a possible follow-up but is unnecessary at these sizes.
    a = jnp.take(proj[:, :H], src, axis=0)      # (E, H) = h[src] @ W1a + b1
    b = jnp.take(proj[:, H:], dst, axis=0)      # (E, H) = h[dst] @ W1b

    # Tile size: multiple of 128 (lane-dense output), as large as reasonable,
    # but keep >=2 grid steps when E allows so v7x can use both TensorCores.
    te = min(tile_e_max, max(128, _round_up(pl.cdiv(E, 2), 128)))
    e_pad = _round_up(E, te)
    n_e_tiles = e_pad // te
    a = jnp.pad(a, ((0, e_pad - E), (0, 0)))
    b = jnp.pad(b, ((0, e_pad - E), (0, 0)))

    w2_row = w2_t.astype(f32).reshape(1, H)     # (1, H)
    b2_sc = b2.astype(f32).reshape(1, 1)        # (1, 1) scalar -> SMEM

    out = pl.pallas_call(
        edge_score_kernel,
        out_shape=jax.ShapeDtypeStruct((n_e_tiles, te), f32),
        grid_spec=pltpu.PrefetchScalarGridSpec(
            num_scalar_prefetch=0,
            grid=(n_e_tiles,),
            in_specs=[
                pl.BlockSpec((te, H), lambda i: (i, 0)),
                pl.BlockSpec((te, H), lambda i: (i, 0)),
                pl.BlockSpec((1, H), lambda i: (0, 0)),
                pl.BlockSpec(memory_space=pltpu.MemorySpace.SMEM),  # b2 scalar
            ],
            out_specs=pl.BlockSpec((1, te), lambda i: (i, 0)),
        ),
        compiler_params=pltpu.CompilerParams(
            dimension_semantics=("parallel",),
            vmem_limit_bytes=32 * 1024 * 1024,
        ),
        cost_estimate=pl.CostEstimate(
            flops=3 * e_pad * H,
            transcendentals=0,
            bytes_accessed=4 * (2 * e_pad * H + e_pad + H + 1),
        ),
    )(a, b, w2_row, b2_sc)

    return out.reshape(-1)[:E]      # == torch .squeeze(1)


if __name__ == "__main__":
    key = jax.random.PRNGKey(0)
    k_h, k_src, k_dst, k_w1, k_b1, k_w2, k_b2 = jax.random.split(key, 7)

    h_feats = 32     # hidden feature size (H); node features are h_feats wide
    N = 16           # number of graph nodes
    E = 500          # number of edges (deliberately NOT a tile multiple)

    h = jax.random.normal(k_h, (N, h_feats), dtype=jnp.float32)
    src = jax.random.randint(k_src, (E,), 0, N, dtype=jnp.int32)
    dst = jax.random.randint(k_dst, (E,), 0, N, dtype=jnp.int32)

    # nn.Linear(2F, F) and nn.Linear(F, 1) parameters, stored transposed [in, out].
    w1_t = jax.random.normal(k_w1, (2 * h_feats, h_feats), dtype=jnp.float32) * 0.1
    b1 = jax.random.normal(k_b1, (h_feats,), dtype=jnp.float32) * 0.1
    w2_t = jax.random.normal(k_w2, (h_feats, 1), dtype=jnp.float32) * 0.1
    b2 = jax.random.normal(k_b2, (1,), dtype=jnp.float32) * 0.1

    score = mlp_predictor_forward(h, src, dst, w1_t, b1, w2_t, b2)
    score = jax.block_until_ready(score)

    # Pure-JAX reference (original concat formulation, no Pallas).
    x_ref = jnp.concatenate([h[src], h[dst]], axis=1)
    ref = (jnp.maximum(x_ref @ w1_t + b1, 0.0) @ w2_t + b2)[:, 0]
    assert score.shape == (E,)
    assert jnp.allclose(score, ref, atol=1e-3, rtol=1e-3), \
        float(jnp.max(jnp.abs(score - ref)))

    print("KERNEL_OK")
</pallas_src>

<mosaic_0001>
module attributes {stable_mosaic.version = 11 : i64} {
  func.func @node_proj_kernel(%arg0: i32, %arg1: memref<16x32xf32, #tpu.memory_space<vmem>>, %arg2: memref<32x64xf32, #tpu.memory_space<vmem>>, %arg3: memref<1x64xf32, #tpu.memory_space<vmem>>, %arg4: memref<16x64xf32, #tpu.memory_space<vmem>>) attributes {dimension_semantics = [#tpu.dimension_semantics<parallel>], iteration_bounds = array<i64: 1>, scalar_prefetch = 0 : i64, scratch_operands = 0 : i64, tpu.core_type = #tpu.core_type<tc>, window_params = [{transform_indices = @transform_0, window_bounds = array<i64: 16, 32>}, {pipeline_mode = #tpu.pipeline_mode<synchronous>, transform_indices = @transform_1, window_bounds = array<i64: 32, 64>}, {pipeline_mode = #tpu.pipeline_mode<synchronous>, transform_indices = @transform_2, window_bounds = array<i64: 1, 64>}, {transform_indices = @transform_3, window_bounds = array<i64: 16, 64>}]} {
    %c0 = arith.constant 0 : index
    %c0_0 = arith.constant 0 : index
    %0 = vector.load %arg1[%c0, %c0_0] : memref<16x32xf32, #tpu.memory_space<vmem>>, vector<16x32xf32>
    %c0_1 = arith.constant 0 : index
    %c0_2 = arith.constant 0 : index
    %1 = vector.load %arg2[%c0_1, %c0_2] : memref<32x64xf32, #tpu.memory_space<vmem>>, vector<32x64xf32>
    %cst = arith.constant dense<0.000000e+00> : vector<16x64xf32>
    %2 = tpu.matmul %0, %1, %cst {dimension_numbers = #tpu.dot_dimension_numbers<[1], [0], [0], [1], [0, 0, 1, 1], [], []>} : vector<16x32xf32>, vector<32x64xf32>, vector<16x64xf32> -> vector<16x64xf32>
    %c0_3 = arith.constant 0 : index
    %c0_4 = arith.constant 0 : index
    %3 = vector.load %arg3[%c0_3, %c0_4] : memref<1x64xf32, #tpu.memory_space<vmem>>, vector<1x64xf32>
    %4 = vector.broadcast %3 : vector<1x64xf32> to vector<16x64xf32>
    %5 = arith.addf %2, %4 : vector<16x64xf32>
    %c0_5 = arith.constant 0 : index
    %c0_6 = arith.constant 0 : index
    %6 = vector.load %arg4[%c0_5, %c0_6] : memref<16x64xf32, #tpu.memory_space<vmem>>, vector<16x64xf32>
    tpu.vector_store %arg4[%c0_5, %c0_6], %5 {strides = array<i32>} : memref<16x64xf32, #tpu.memory_space<vmem>>, vector<16x64xf32>,
    return
  }
  func.func @transform_0(%arg0: i32) -> (i32, i32) {
    %c0_i32 = arith.constant 0 : i32
    %c0_i32_0 = arith.constant 0 : i32
    return %arg0, %c0_i32 : i32, i32
  }
  func.func @transform_1(%arg0: i32) -> (i32, i32) {
    %c0_i32 = arith.constant 0 : i32
    %c0_i32_0 = arith.constant 0 : i32
    %c0_i32_1 = arith.constant 0 : i32
    return %c0_i32, %c0_i32_0 : i32, i32
  }
  func.func @transform_2(%arg0: i32) -> (i32, i32) {
    %c0_i32 = arith.constant 0 : i32
    %c0_i32_0 = arith.constant 0 : i32
    %c0_i32_1 = arith.constant 0 : i32
    return %c0_i32, %c0_i32_0 : i32, i32
  }
  func.func @transform_3(%arg0: i32) -> (i32, i32) {
    %c0_i32 = arith.constant 0 : i32
    %c0_i32_0 = arith.constant 0 : i32
    return %arg0, %c0_i32 : i32, i32
  }
}

</mosaic_0001>

<llo_original>
// kernel: tpu_custom_call.1
$region0: #{tpu_custom_call.1}
  #allocation0 [shape = 'u32[]', space=smem, size = 0x4, offset = 0x4, fixed_abs, tag = 'smem constant byte address 0x4 - core index']
  #allocation1 [shape = 'u32[72,128]{1,0:T(1,128)}', space=vmem, size = 0x9000, scoped, tag = 'internal scratch']
  %s0 = inlined_call_operand.hbm [shape: f32[16,32], index: 0, kind: input, shape index: {}]
  %s1 = inlined_call_operand.hbm [shape: f32[32,64], index: 1, kind: input, shape index: {}]
  %s2 = inlined_call_operand.vmem [shape: f32[1,64], index: 2, kind: input, shape index: {}]
  %s3 = inlined_call_operand.hbm [shape: f32[16,64], index: 3, kind: output, shape index: {}]
  %s4 = sld [smem:[#allocation0]]
  $region30: #{tpu_custom_call.1} parent=0
    _
  %s6 = ssub.s32 1, %s4
  %s7 = scalar_select 0, %s6, %s4
  $region1: #{tpu_custom_call.1} parent=0
    #allocation2 [shape = 'u8[8192]{0}', space=vmem, size = 0x2000, scoped, tag = 'input window, operand 0, single buffered']
    #allocation3 [shape = 's32[1]{0}', space=sflag, size = 0x4, scoped, tag = 'scoped memory for tpu_custom_call.1']
    #allocation4 [shape = 's32[1]{0}', space=sflag, size = 0x4, scoped, tag = 'scoped memory for tpu_custom_call.1']
    #allocation5 [shape = 'u8[16384]{0}', space=vmem, size = 0x4000, scoped, tag = 'input window, operand 1, single buffered']
    #allocation6 [shape = 's32[1]{0}', space=sflag, size = 0x4, scoped, tag = 'scoped memory for tpu_custom_call.1']
    #allocation7 [shape = 'u8[8192]{0}', space=vmem, size = 0x2000, scoped, tag = 'output window, operand 0, single buffered']
    %8 = vsyncpa [#allocation3], 0
    %9 = vsyncpa [#allocation6], 0
    %10 = vsyncpa [#allocation4], 0
    // Predicated region
    $region2: #{tpu_custom_call.1} parent=1 // pred_check
      _
    $region3: #{tpu_custom_call.1} parent=1 // pred_check_branch
      %12 = sbr.rel (0) target = $region5
    $region4: #{tpu_custom_call.1} parent=1 // pred_region
      %14 = vsyncadd [#allocation3], 0
      %s15 = sshll.u32 %s0, 4
      %s16 = int_to_ptr.hbm [resolvable:$true] %s15
      %s17 = sshll.u32 [#allocation2], 4
      %s18 = int_to_ptr.vmem [resolvable:$true] %s17
      %23 = dma.hbm_to_vmem [thread:$0]  %s16, 256, %s18, [#allocation3], 128, 128, 8
    $region5: #{tpu_custom_call.1} parent=1 // pred_fallthru
      _
    // Predicated region
    $region6: #{tpu_custom_call.1} parent=1 // pred_check
      _
    $region7: #{tpu_custom_call.1} parent=1 // pred_check_branch
      %25 = sbr.rel (0) target = $region9
    $region8: #{tpu_custom_call.1} parent=1 // pred_region
      %27 = vsyncadd [#allocation6], 0
      %s28 = sshll.u32 %s1, 4
      %s29 = int_to_ptr.hbm [resolvable:$true] %s28
      %s30 = sshll.u32 [#allocation5], 4
      %s31 = int_to_ptr.vmem [resolvable:$true] %s30
      %36 = dma.hbm_to_vmem [thread:$0]  %s29, 512, %s31, [#allocation6], 128, 128, 8
    $region9: #{tpu_custom_call.1} parent=1 // pred_fallthru
      _
    // Predicated region
    $region10: #{tpu_custom_call.1} parent=1 // pred_check
      _
    $region11: #{tpu_custom_call.1} parent=1 // pred_check_branch
      %38 = sbr.rel (0) target = $region13
    $region12: #{tpu_custom_call.1} parent=1 // pred_region
      _
    $region13: #{tpu_custom_call.1} parent=1 // pred_fallthru
      _
    // Predicated region
    $region14: #{tpu_custom_call.1} parent=1 // pred_check
      _
    $region15: #{tpu_custom_call.1} parent=1 // pred_check_branch
      %40 = sbr.rel (0) target = $region17
    $region16: #{tpu_custom_call.1} parent=1 // pred_region
      %42 = dma.done [#allocation3], 256
    $region17: #{tpu_custom_call.1} parent=1 // pred_fallthru
      _
    // Predicated region
    $region18: #{tpu_custom_call.1} parent=1 // pred_check
      _
    $region19: #{tpu_custom_call.1} parent=1 // pred_check_branch
      %44 = sbr.rel (0) target = $region21
    $region20: #{tpu_custom_call.1} parent=1 // pred_region
      %46 = dma.done [#allocation6], 512
    $region21: #{tpu_custom_call.1} parent=1 // pred_fallthru
      _
    %v47 = vld [vmem:[#allocation2] sm:$0xff]
    %v48 = vld [vmem:[#allocation2 + $0x8] sm:$0xff]
    %v49 = vld [vmem:[#allocation5] sm:$0xff]
    %v50 = vld [vmem:[#allocation5 + $0x8] sm:$0xff]
    %v51 = vld [vmem:[#allocation5 + $0x10] sm:$0xff]
    %v52 = vld [vmem:[#allocation5 + $0x18] sm:$0xff]
    %v53 = vld [vmem:[%s2] sm:$0x1]
    %v55 = vperm.slane %v53, 0
    %vm57 = vcmask 261120
    %v59 = vsel %vm57, %v47, 0
    %v62 = vsel %vm57, %v48, 0
    %64 = vmatpush.msra.mxu0 0.0
    %65 = vmatpush.msra.mxu0 0.0
    %66 = vmatpush.msra.mxu0 0.0
    %67 = vmatpush.msra.mxu0 0.0
    %68 = vmatpush.msra.mxu0 0.0
    %69 = vmatpush.msra.mxu0 0.0
    %70 = vmatpush.msra.mxu0 0.0
    %71 = vmatpush.msra.mxu0 0.0
    %72 = vmatpush.msra.mxu0 0.0
    %73 = vmatpush.msra.mxu0 0.0
    %74 = vmatpush.msra.mxu0 0.0
    %75 = vmatpush.msra.mxu0 0.0
    %76 = vmatpush.msra.mxu0 %v52
    %77 = vmatpush.msra.mxu0 %v51
    %78 = vmatpush.msra.mxu0 %v50
    %79 = vmatpush.msra.mxu0 %v49
    %80 = vmatmul.f32.gmra.mxu0 %v59
    %v81 = vpop.f32.mrf.mxu0
    %v82 = vadd.f32 %v55, %v81
    %83 = vmatmul.f32.gmra.mxu0 %v62
    %v84 = vpop.f32.mrf.mxu0
    %v85 = vadd.f32 %v55, %v84
    %86 = vdwg.mxu0
    %vm87 = vcmask 523264
    %88 = vst.msk [vmem:[#allocation7] sm:$0xff] %vm87, %v82
    %89 = vst.msk [vmem:[#allocation7 + $0x8] sm:$0xff] %vm87, %v85
    // Predicated region
    $region22: #{tpu_custom_call.1} parent=1 // pred_check
      _
    $region23: #{tpu_custom_call.1} parent=1 // pred_check_branch
      %91 = sbr.rel (0) target = $region25
    $region24: #{tpu_custom_call.1} parent=1 // pred_region
      %93 = vsyncadd [#allocation4], 0
      %s94 = sshll.u32 [#allocation7], 4
      %s95 = int_to_ptr.vmem [resolvable:$true] %s94
      %s96 = sshll.u32 %s3, 4
      %s97 = int_to_ptr.hbm [resolvable:$true] %s96
      %102 = dma.vmem_to_hbm [thread:$0]  %s95, 256, %s97, [#allocation4], 128, 128, 8
    $region25: #{tpu_custom_call.1} parent=1 // pred_fallthru
      _
    // Predicated region
    $region26: #{tpu_custom_call.1} parent=1 // pred_check
      _
    $region27: #{tpu_custom_call.1} parent=1 // pred_check_branch
      %104 = sbr.rel (0) target = $region29
    $region28: #{tpu_custom_call.1} parent=1 // pred_region
      %106 = dma.done [#allocation4], 256
    $region29: #{tpu_custom_call.1} parent=1 // pred_fallthru
      _
    %107 = vsyncpa [#allocation3], 1
    %108 = vsyncpa [#allocation6], 1
    %109 = vsyncpa [#allocation4], 1

</llo_original>
